<compile_context>
chip_gen: v7x
topology: tpu7x:2x2x1
jax: 0.10.0
libtpu: 0.0.40
codegen_flags: <defaults>
</compile_context>

<pallas_src>
import functools

import jax
import jax.numpy as jnp
from jax.experimental import pallas as pl
from jax.experimental.pallas import tpu as pltpu

# ----------------------------- static config -----------------------------
CHANNELS = 8                      # must be even
HALF = CHANNELS // 2
HIDDEN = 32                       # hidden_channels
FILTER = 64                       # filter_channels
N_HEADS = 2
N_LAYERS = 2
KERNEL_SIZE = 3
HEAD_DIM = HIDDEN // N_HEADS
LN_EPS = 1e-5
NCOL = 7                          # packed per-layer column vectors in the colv slab:
                                  #   0: qkv bias (3H rows, scale folded into q part)
                                  #   1: o bias   2: ln0 gamma   3: ln0 beta
                                  #   4: ffn conv2 bias   5: ln1 gamma   6: ln1 beta
                                  # plus 2 global columns: pre bias, post bias


# ------------- shared math helpers (kernel + pure-JAX reference) -------------
def _layer_norm_cmajor(x, g, b):
    # x: [C, T]; LayerNorm over the channel axis (matches attentions.LayerNorm).
    mean = jnp.mean(x, axis=0, keepdims=True)
    var = jnp.mean(jnp.square(x - mean), axis=0, keepdims=True)
    return (x - mean) * jax.lax.rsqrt(var + LN_EPS) * g + b


def _ref_softmax(s):
    m = jnp.max(s, axis=-1, keepdims=True)
    e = jnp.exp(s - m)
    return e / jnp.sum(e, axis=-1, keepdims=True)


# ----------------------- roll-direction guard (one-time probe) -----------------------
_ROLL_LIKE_NUMPY = None


def _roll_like_numpy():
    """Probe once that pltpu.roll matches jnp.roll (element i -> i+shift, wrap at the end).

    The causal-conv slab needs "shift right in time"; if the hardware rotate uses the
    opposite convention we compensate with shift = T - s (same wrapped region, same mask).
    """
    global _ROLL_LIKE_NUMPY
    if _ROLL_LIKE_NUMPY is None:
        def probe(x_ref, o_ref):
            o_ref[...] = pltpu.roll(x_ref[...], 1, 1)
        x = jax.lax.broadcasted_iota(jnp.float32, (8, 128), 1)
        y = pl.pallas_call(probe, out_shape=jax.ShapeDtypeStruct((8, 128), jnp.float32))(x)
        _ROLL_LIKE_NUMPY = bool(jnp.asarray(y)[0, 1] == 0.0)
    return _ROLL_LIKE_NUMPY


@functools.lru_cache(maxsize=None)
def _vmem_limit_bytes():
    # Default scoped VMEM (16/32 MiB) binds long before physical capacity; leave headroom
    # for the double-buffered I/O blocks: ~100 MiB on v5e/v6e (128 MiB), ~48 MiB on v7x (64).
    try:
        cap = int(pltpu.get_tpu_info().vmem_capacity_bytes)
    except Exception:
        cap = 64 << 20
    return min(max(cap - (16 << 20), 32 << 20), 100 << 20)


def _causal_slab(x, k, roll_like_numpy, col_iota):
    """x: [C, T] (time on lanes, already in the compute dtype). Returns [k*C, T] where rows
    j*C:(j+1)*C hold x shifted right in time by (k-1-j) with causal zero-fill, so one
    [Cout, k*C] @ [k*C, T] matmul implements the whole left-padded k-tap conv.
    col_iota: hoisted (1, T) lane index (JAX does not CSE broadcasts -- build it once)."""
    c, t = x.shape
    zero = jnp.zeros((), x.dtype)
    parts = []
    for j in range(k):
        s = k - 1 - j
        if s == 0:
            parts.append(x)
        else:
            amt = s if roll_like_numpy else t - s
            shifted = pltpu.roll(x, amt, 1)                  # lane (time) rotation on the XLU
            parts.append(jnp.where(col_iota >= s, shifted, zero))
    return jnp.concatenate(parts, axis=0)


def _attention(qh, kh, vh, *, causal, kv_chunk, exact_div):
    """qh/kh/vh: [N_HEADS, HEAD_DIM, T] in the MXU compute dtype.

    KV-chunked online-softmax attention: no [T, T] f32 tensor is ever live.  Scores are
    built transposed ([heads, Tk_chunk, Tq]) so the running max/denominator and the final
    normalization all stay lane-major.  Returns float32 [N_HEADS, HEAD_DIM, T]."""
    nh, d, t = qh.shape
    if kv_chunk and t > kv_chunk and t % kv_chunk == 0:
        csize = kv_chunk
    else:
        csize = t
    nchunks = t // csize

    if causal:
        key_local = jax.lax.broadcasted_iota(jnp.int32, (1, csize, t), 1)
        query_idx = jax.lax.broadcasted_iota(jnp.int32, (1, csize, t), 2)
        qk_diff = query_idx - key_local            # precompute once; compare vs scalar per chunk

    m = jnp.full((nh, 1, t), -1e30, jnp.float32)   # running max
    l = jnp.zeros((nh, 1, t), jnp.float32)         # running denominator
    acc = jnp.zeros((nh, d, t), jnp.float32)       # running numerator (P @ V)
    for c in range(nchunks):                       # static trip count (T static at trace time)
        c0 = c * csize
        kc = kh[:, :, c0:c0 + csize]
        vc = vh[:, :, c0:c0 + csize]
        st = jax.lax.dot_general(kc, qh, (((1,), (1,)), ((0,), (0,))),
                                 preferred_element_type=jnp.float32)      # [H, Tkc, Tq]
        if causal:
            st = jnp.where(qk_diff >= c0, st, -1e4)       # same fill as PyTorch masked_fill
        m_new = jnp.maximum(m, jnp.max(st, axis=1, keepdims=True))
        alpha = jnp.exp(m - m_new)
        p = jnp.exp(st - m_new)
        l = alpha * l + jnp.sum(p, axis=1, keepdims=True)
        acc = alpha * acc + jax.lax.dot_general(vc, p.astype(vc.dtype),
                                                (((2,), (1,)), ((0,), (0,))),
                                                preferred_element_type=jnp.float32)
        m = m_new
    # Normalization folded into one [H, D, T] multiply (no T^2-sized divide); the approx
    # reciprocal rides the otherwise-idle EUP slot on the fast (bf16) path.
    inv_l = 1.0 / l if exact_div else pl.reciprocal(l, approx=True)
    return acc * inv_l


# ----------------------------- the Pallas kernel -----------------------------
def _coupling_kernel(reverse, use_bf16, causal_attn, kv_chunk, bblk, roll_like_numpy,
                     x_ref, pre_w_ref, post_w_ref, attn_wt_ref, colv_ref, f1_wb_ref, f2_w_ref,
                     y_ref, *logdet_refs):
    cdt = jnp.bfloat16 if use_bf16 else jnp.float32
    mm = functools.partial(jnp.dot, preferred_element_type=jnp.float32)
    mm_t = functools.partial(jax.lax.dot_general,                       # lhs stored transposed
                             dimension_numbers=(((0,), (0,)), ((), ())),
                             preferred_element_type=jnp.float32)
    t = x_ref.shape[2]

    # hoisted time-index iota, reused by every causal-conv mask (JAX doesn't CSE broadcasts)
    col1 = jax.lax.broadcasted_iota(jnp.int32, (1, t), 1)

    # ---- weights: loaded / cast once per grid step, shared by all bblk batch elements ----
    colv = colv_ref[...]
    gbase = N_LAYERS * NCOL
    pre_w = pre_w_ref[...].astype(cdt)
    post_w = post_w_ref[...].astype(cdt)
    pre_b = colv[:HIDDEN, gbase:gbase + 1]
    post_b = colv[:2 * HALF, gbase + 1:gbase + 2]

    layers = []
    for i in range(N_LAYERS):
        base = i * NCOL
        layers.append((
            attn_wt_ref[i, :, :3 * HIDDEN].astype(cdt),      # W_qkv^T [H, 3H] (scale folded in)
            attn_wt_ref[i, :, 3 * HIDDEN:].astype(cdt),      # W_o^T   [H, H]
            colv[:, base + 0:base + 1],                      # qkv bias [3H, 1]
            colv[:HIDDEN, base + 1:base + 2],                # o bias
            colv[:HIDDEN, base + 2:base + 3],                # ln0 gamma
            colv[:HIDDEN, base + 3:base + 4],                # ln0 beta
            colv[:HIDDEN, base + 4:base + 5],                # ffn conv2 bias
            colv[:HIDDEN, base + 5:base + 6],                # ln1 gamma
            colv[:HIDDEN, base + 6:base + 7],                # ln1 beta
            f1_wb_ref[i, :, :KERNEL_SIZE * HIDDEN].astype(cdt),   # conv1 weight [F, 3H]
            f1_wb_ref[i, :, KERNEL_SIZE * HIDDEN:],               # conv1 bias   [F, 1]
            f2_w_ref[i].astype(cdt),                              # conv2 weight [H, 3F]
        ))

    for j in range(bblk):                           # batch elements handled by this grid step
        x = x_ref[j]                                # [CHANNELS, T], time on lanes
        x0 = x[:HALF, :]                            # passes through unchanged
        x1 = x[HALF:, :]

        # pre: 1x1 conv (half -> hidden)
        h = mm(pre_w, x0.astype(cdt)) + pre_b       # [HIDDEN, T] f32

        # enc: attentions.FFT (isflow, g=None, dropout=0)
        for (wqkv_t, wo_t, qkvb, ob, ln0g, ln0b, f2b, ln1g, ln1b, f1w, f1b, f2w) in layers:
            # fused Q/K/V projection: one MXU issue with 96 output rows, one bias add
            qkv = mm_t(wqkv_t, h.astype(cdt)) + qkvb                    # [3H, T] f32
            qh = qkv[0 * HIDDEN:1 * HIDDEN].reshape(N_HEADS, HEAD_DIM, t).astype(cdt)
            kh = qkv[1 * HIDDEN:2 * HIDDEN].reshape(N_HEADS, HEAD_DIM, t).astype(cdt)
            vh = qkv[2 * HIDDEN:3 * HIDDEN].reshape(N_HEADS, HEAD_DIM, t).astype(cdt)
            ctx = _attention(qh, kh, vh, causal=causal_attn, kv_chunk=kv_chunk,
                             exact_div=not use_bf16)                    # [NH, D, T] f32
            y_att = mm_t(wo_t, ctx.reshape(HIDDEN, t).astype(cdt)) + ob
            h = _layer_norm_cmajor(h + y_att, ln0g, ln0b)

            # FFN: two causal k=3 convs, each fused into one deeper matmul over a shifted slab
            # (operands cast to the compute dtype BEFORE the 3x-larger slab is built).
            z = mm(f1w, _causal_slab(h.astype(cdt), KERNEL_SIZE, roll_like_numpy, col1)) + f1b
            z = jnp.maximum(z, 0.0)
            z = mm(f2w, _causal_slab(z.astype(cdt), KERNEL_SIZE, roll_like_numpy, col1)) + f2b
            h = _layer_norm_cmajor(h + z, ln1g, ln1b)

        # post: 1x1 conv (hidden -> 2*half), split into m / logs (mean_only=False)
        stats = mm(post_w, h.astype(cdt)) + post_b                      # [2*HALF, T]
        m = stats[:HALF, :]
        logs = stats[HALF:, :]

        if not reverse:
            x1n = m + x1 * jnp.exp(logs)
            ld_ref, = logdet_refs
            # per-lane partial logdet (summed over channels); the wrapper reduces over time
            ld_ref[j] = jnp.sum(logs, axis=0, keepdims=True)
        else:
            x1n = (x1 - m) * jnp.exp(-logs)

        # one full-tile (8, T) unmasked store instead of two masked half-tile stores
        y_ref[j] = jnp.concatenate([x0, x1n], axis=0)


def _replicated_spec(shape):
    zeros = (0,) * len(shape)
    return pl.BlockSpec(shape, lambda b, z=zeros: z)


def transformer_coupling_layer(x_nct, params, reverse=False, use_bf16=True,
                               causal_attn=False, kv_chunk=512, batch_block=None):
    """x_nct: [B, CHANNELS, T] float32 (PyTorch NCT layout, consumed directly).
    `params` is the packed dict produced by pack_params()."""
    x = x_nct.astype(jnp.float32)
    B, C, T = x.shape
    assert C == CHANNELS

    if batch_block is None:
        # Several batch elements per grid step amortize the ~0.35us/step serial-grid overhead
        # (v5e/v6e); keep >= 2 grid steps so ("parallel",) still shards across v7x's 2 TCs.
        target = max(1, (B + 1) // 2)
        batch_block = max(d for d in range(1, target + 1) if B % d == 0)
    assert B % batch_block == 0
    grid = (B // batch_block,)

    order = ('pre_w', 'post_w', 'attn_wt', 'colv', 'f1_wb', 'f2_w')
    weights = [params[k] for k in order]

    x_spec = pl.BlockSpec((batch_block, C, T), lambda b: (b, 0, 0))
    in_specs = [x_spec] + [_replicated_spec(w.shape) for w in weights]

    if reverse:
        out_shape = jax.ShapeDtypeStruct((B, C, T), jnp.float32)
        out_specs = pl.BlockSpec((batch_block, C, T), lambda b: (b, 0, 0))
    else:
        out_shape = (jax.ShapeDtypeStruct((B, C, T), jnp.float32),
                     jax.ShapeDtypeStruct((B, 1, T), jnp.float32))
        out_specs = (pl.BlockSpec((batch_block, C, T), lambda b: (b, 0, 0)),
                     pl.BlockSpec((batch_block, 1, T), lambda b: (b, 0, 0)))

    kernel = functools.partial(_coupling_kernel, bool(reverse), bool(use_bf16),
                               bool(causal_attn), int(kv_chunk), int(batch_block),
                               _roll_like_numpy())
    res = pl.pallas_call(
        kernel,
        out_shape=out_shape,
        grid_spec=pltpu.PrefetchScalarGridSpec(
            num_scalar_prefetch=0, grid=grid, in_specs=in_specs, out_specs=out_specs),
        compiler_params=pltpu.CompilerParams(
            dimension_semantics=("parallel",),
            vmem_limit_bytes=_vmem_limit_bytes()),
    )(x, *weights)

    if reverse:
        return res
    y, ld = res
    return y, jnp.sum(ld[:, 0, :], axis=-1)


# ----------------------------- parameter init & host-side packing -----------------------------
def init_params(key):
    """Logical (PyTorch-like) parameters.  The PyTorch module zero-inits `post` (identity
    coupling at init); small random values are used so the exp/affine path is exercised."""
    ks = jax.random.split(key, 20)
    w = lambda k, shape, s: (s * jax.random.normal(k, shape)).astype(jnp.float32)
    L, H, F, K = N_LAYERS, HIDDEN, FILTER, KERNEL_SIZE
    return {
        'pre_w': w(ks[0], (H, HALF), 0.3), 'pre_b': w(ks[1], (H,), 0.1),
        'post_w': w(ks[2], (2 * HALF, H), 0.02), 'post_b': w(ks[3], (2 * HALF,), 0.01),
        'wq': w(ks[4], (L, H, H), 0.15), 'wk': w(ks[5], (L, H, H), 0.15),
        'wv': w(ks[6], (L, H, H), 0.15), 'wo': w(ks[7], (L, H, H), 0.15),
        'qb': w(ks[8], (L, H), 0.05), 'kb': w(ks[9], (L, H), 0.05),
        'vb': w(ks[10], (L, H), 0.05), 'ob': w(ks[11], (L, H), 0.05),
        'ln0_g': 1.0 + w(ks[12], (L, H), 0.05), 'ln0_b': w(ks[13], (L, H), 0.05),
        'ln1_g': 1.0 + w(ks[14], (L, H), 0.05), 'ln1_b': w(ks[15], (L, H), 0.05),
        # causal convs stored tap-major flat: [Cout, K*Cin], tap j == PyTorch weight[:, :, j]
        'ffn1_w': w(ks[16], (L, F, K * H), 0.1), 'ffn1_b': w(ks[17], (L, F), 0.05),
        'ffn2_w': w(ks[18], (L, H, K * F), 0.08), 'ffn2_b': w(ks[19], (L, H), 0.05),
    }


def pack_params(p):
    """Pack the ~20 logical parameters into 6 kernel arrays (lane-dense, scale folded)."""
    L, H = N_LAYERS, HIDDEN
    scale = HEAD_DIM ** -0.5                      # 0.25 -- exact power of two, folding is exact
    # attention weights as W^T packed [L, H_in, 4*H_out]  (= (2, 32, 128), exactly lane-dense)
    attn_wt = jnp.concatenate([
        jnp.transpose(p['wq'] * scale, (0, 2, 1)),
        jnp.transpose(p['wk'], (0, 2, 1)),
        jnp.transpose(p['wv'], (0, 2, 1)),
        jnp.transpose(p['wo'], (0, 2, 1))], axis=-1)
    # all per-layer / global column vectors in one [3H, L*NCOL + 2] slab
    colv = jnp.zeros((3 * H, L * NCOL + 2), jnp.float32)
    for i in range(L):
        b = i * NCOL
        colv = colv.at[:, b + 0].set(
            jnp.concatenate([p['qb'][i] * scale, p['kb'][i], p['vb'][i]]))
        colv = colv.at[:H, b + 1].set(p['ob'][i])
        colv = colv.at[:H, b + 2].set(p['ln0_g'][i])
        colv = colv.at[:H, b + 3].set(p['ln0_b'][i])
        colv = colv.at[:H, b + 4].set(p['ffn2_b'][i])
        colv = colv.at[:H, b + 5].set(p['ln1_g'][i])
        colv = colv.at[:H, b + 6].set(p['ln1_b'][i])
    g = L * NCOL
    colv = colv.at[:H, g + 0].set(p['pre_b'])
    colv = colv.at[:2 * HALF, g + 1].set(p['post_b'])
    f1_wb = jnp.concatenate([p['ffn1_w'], p['ffn1_b'][..., None]], axis=-1)   # [L, F, K*H+1]
    return {'pre_w': p['pre_w'], 'post_w': p['post_w'], 'attn_wt': attn_wt,
            'colv': colv, 'f1_wb': f1_wb, 'f2_w': p['ffn2_w']}


# ----------------------------- pure-JAX reference (PyTorch math) -----------------------------
def _ref_causal_conv(x, w_flat, b, k, cdt):
    cin, t = x.shape
    xp = jnp.concatenate([jnp.zeros((cin, k - 1), x.dtype), x], axis=1)
    acc = jnp.zeros((w_flat.shape[0], t), jnp.float32)
    for j in range(k):
        wj = w_flat[:, j * cin:(j + 1) * cin]
        acc = acc + jnp.dot(wj.astype(cdt), xp[:, j:j + t].astype(cdt),
                            preferred_element_type=jnp.float32)
    return acc + b[:, None]


def _ref_mha(h, wq, wk, wv, wo, qb, kb, vb, ob, cdt, causal):
    t = h.shape[1]
    hc = h.astype(cdt)
    q = jnp.dot(wq.astype(cdt), hc, preferred_element_type=jnp.float32) + qb[:, None]
    k = jnp.dot(wk.astype(cdt), hc, preferred_element_type=jnp.float32) + kb[:, None]
    v = jnp.dot(wv.astype(cdt), hc, preferred_element_type=jnp.float32) + vb[:, None]
    outs = []
    for head in range(N_HEADS):
        lo = head * HEAD_DIM
        qh = (q[lo:lo + HEAD_DIM] * (HEAD_DIM ** -0.5)).astype(cdt)
        kh = k[lo:lo + HEAD_DIM].astype(cdt)
        vh = v[lo:lo + HEAD_DIM].astype(cdt)
        scores = jnp.dot(qh.T, kh, preferred_element_type=jnp.float32)       # [Tq, Tk]
        if causal:
            row = jnp.arange(t)[:, None]
            col = jnp.arange(t)[None, :]
            scores = jnp.where(col <= row, scores, -1e4)
        p = _ref_softmax(scores)
        outs.append(jnp.dot(vh, p.astype(cdt).T, preferred_element_type=jnp.float32))
    attn = jnp.concatenate(outs, axis=0)
    return jnp.dot(wo.astype(cdt), attn.astype(cdt),
                   preferred_element_type=jnp.float32) + ob[:, None]


def reference_forward(x_nct, p, reverse=False, use_bf16=True, causal_attn=False):
    """Non-Pallas reference mirroring the PyTorch forward; use_bf16=False is f32-faithful."""
    cdt = jnp.bfloat16 if use_bf16 else jnp.float32
    x = x_nct.astype(jnp.float32)
    ys, lds = [], []
    for b in range(x.shape[0]):
        xb = x[b]
        x0, x1 = xb[:HALF], xb[HALF:]
        h = jnp.dot(p['pre_w'].astype(cdt), x0.astype(cdt),
                    preferred_element_type=jnp.float32) + p['pre_b'][:, None]
        for i in range(N_LAYERS):
            y_att = _ref_mha(h, p['wq'][i], p['wk'][i], p['wv'][i], p['wo'][i],
                             p['qb'][i], p['kb'][i], p['vb'][i], p['ob'][i], cdt, causal_attn)
            h = _layer_norm_cmajor(h + y_att, p['ln0_g'][i][:, None], p['ln0_b'][i][:, None])
            z = _ref_causal_conv(h, p['ffn1_w'][i], p['ffn1_b'][i], KERNEL_SIZE, cdt)
            z = jnp.maximum(z, 0.0)
            z = _ref_causal_conv(z, p['ffn2_w'][i], p['ffn2_b'][i], KERNEL_SIZE, cdt)
            h = _layer_norm_cmajor(h + z, p['ln1_g'][i][:, None], p['ln1_b'][i][:, None])
        stats = jnp.dot(p['post_w'].astype(cdt), h.astype(cdt),
                        preferred_element_type=jnp.float32) + p['post_b'][:, None]
        m, logs = stats[:HALF], stats[HALF:]
        if not reverse:
            ys.append(jnp.concatenate([x0, m + x1 * jnp.exp(logs)], axis=0))
            lds.append(jnp.sum(logs))
        else:
            ys.append(jnp.concatenate([x0, (x1 - m) * jnp.exp(-logs)], axis=0))
    y = jnp.stack(ys)
    if reverse:
        return y
    return y, jnp.stack(lds)


if __name__ == "__main__":
    key = jax.random.PRNGKey(0)
    pkey, xkey, xkey2 = jax.random.split(key, 3)
    logical = init_params(pkey)
    packed = pack_params(logical)

    B, T = 2, 128                          # T multiple of 128 keeps every store lane-dense
    x = jax.random.normal(xkey, (B, CHANNELS, T), jnp.float32)   # NCT, like PyTorch

    # --- f32 path: tight check against the f32 (PyTorch-faithful) reference ---
    y32, ld32 = transformer_coupling_layer(x, packed, reverse=False, use_bf16=False)
    y32 = jax.block_until_ready(y32)
    ld32 = jax.block_until_ready(ld32)
    yr32, lr32 = reference_forward(x, logical, reverse=False, use_bf16=False)
    assert y32.shape == (B, CHANNELS, T) and ld32.shape == (B,)
    assert jnp.allclose(y32, yr32, atol=1e-4, rtol=1e-4), "f32 forward output mismatch"
    assert jnp.allclose(ld32, lr32, atol=1e-3, rtol=1e-3), "f32 logdet mismatch"

    # --- batch-blocked grid path (2 batch elements per grid step) must match exactly ---
    yb, ldb = transformer_coupling_layer(x, packed, reverse=False, use_bf16=False,
                                         batch_block=2)
    yb = jax.block_until_ready(yb)
    assert jnp.allclose(yb, y32, atol=1e-6, rtol=1e-6), "batch_block forward mismatch"
    assert jnp.allclose(ldb, ld32, atol=1e-5, rtol=1e-5), "batch_block logdet mismatch"

    # --- bf16 MXU-operand path (v6e/v7x recommendation), checked against matching reference ---
    y, logdet = transformer_coupling_layer(x, packed, reverse=False, use_bf16=True)
    y = jax.block_until_ready(y)
    logdet = jax.block_until_ready(logdet)
    yr, lr = reference_forward(x, logical, reverse=False, use_bf16=True)
    assert jnp.allclose(y, yr, atol=5e-3, rtol=5e-3), "bf16 forward output mismatch"
    assert jnp.allclose(logdet, lr, atol=5e-2, rtol=5e-3), "bf16 logdet mismatch"

    # --- reverse must invert forward (same precision policy) ---
    x_rec = transformer_coupling_layer(y, packed, reverse=True, use_bf16=True)
    x_rec = jax.block_until_ready(x_rec)
    assert jnp.allclose(x_rec, x, atol=1e-4, rtol=1e-4), "reverse is not the inverse of forward"

    # --- KV-chunked online-softmax path (+ optional causal self-attn mask), 2 chunks of 128 ---
    T2 = 256
    x2 = jax.random.normal(xkey2, (B, CHANNELS, T2), jnp.float32)
    yc, ldc = transformer_coupling_layer(x2, packed, reverse=False, use_bf16=False,
                                         causal_attn=True, kv_chunk=128)
    yc = jax.block_until_ready(yc)
    yrc, lrc = reference_forward(x2, logical, reverse=False, use_bf16=False, causal_attn=True)
    assert jnp.allclose(yc, yrc, atol=1e-3, rtol=1e-3), "chunked/causal forward mismatch"
    assert jnp.allclose(ldc, lrc, atol=1e-2, rtol=1e-3), "chunked/causal logdet mismatch"

    print("KERNEL_OK")
</pallas_src>

<mosaic_0001>
module attributes {stable_mosaic.version = 11 : i64} {
  func.func @probe(%arg0: memref<8x128xf32, #tpu.memory_space<vmem>>, %arg1: memref<8x128xf32, #tpu.memory_space<vmem>>) attributes {dimension_semantics = [], scalar_prefetch = 0 : i64, scratch_operands = 0 : i64, tpu.core_type = #tpu.core_type<tc>} {
    %c0 = arith.constant 0 : index
    %c0_0 = arith.constant 0 : index
    %0 = vector.load %arg0[%c0, %c0_0] : memref<8x128xf32, #tpu.memory_space<vmem>>, vector<8x128xf32>
    %c1_i32 = arith.constant 1 : i32
    %1 = tpu.dynamic_rotate %0 by %c1_i32 dim 1 : vector<8x128xf32>, i32 -> vector<8x128xf32>
    %c0_1 = arith.constant 0 : index
    %c0_2 = arith.constant 0 : index
    %2 = vector.load %arg1[%c0_1, %c0_2] : memref<8x128xf32, #tpu.memory_space<vmem>>, vector<8x128xf32>
    tpu.vector_store %arg1[%c0_1, %c0_2], %1 {strides = array<i32>} : memref<8x128xf32, #tpu.memory_space<vmem>>, vector<8x128xf32>,
    return
  }
}

</mosaic_0001>

<llo_original>
// kernel: tpu_custom_call.1
$region0: #{tpu_custom_call.1}
  #allocation0 [shape = 'u32[]', space=smem, size = 0x4, offset = 0x4, fixed_abs, tag = 'smem constant byte address 0x4 - core index']
  #allocation1 [shape = 'u32[144,128]{1,0:T(1,128)}', space=vmem, size = 0x12000, scoped, tag = 'internal scratch']
  %s0 = inlined_call_operand.hbm [shape: f32[8,128], index: 0, kind: input, shape index: {}]
  %s1 = inlined_call_operand.hbm [shape: f32[8,128], index: 1, kind: output, shape index: {}]
  %s2 = sld [smem:[#allocation0]]
  $region18: #{tpu_custom_call.1} parent=0
    _
  %s4 = ssub.s32 1, %s2
  %s5 = scalar_select 0, %s4, %s2
  $region1: #{tpu_custom_call.1} parent=0
    #allocation2 [shape = 'u8[4096]{0}', space=vmem, size = 0x1000, scoped, tag = 'input window, operand 0, single buffered']
    #allocation3 [shape = 's32[1]{0}', space=sflag, size = 0x4, scoped, tag = 'scoped memory for tpu_custom_call.1']
    #allocation4 [shape = 's32[1]{0}', space=sflag, size = 0x4, scoped, tag = 'scoped memory for tpu_custom_call.1']
    #allocation5 [shape = 'u8[4096]{0}', space=vmem, size = 0x1000, scoped, tag = 'output window, operand 0, single buffered']
    %6 = vsyncpa [#allocation3], 0
    %7 = vsyncpa [#allocation4], 0
    // Predicated region
    $region2: #{tpu_custom_call.1} parent=1 // pred_check
      _
    $region3: #{tpu_custom_call.1} parent=1 // pred_check_branch
      %9 = sbr.rel (0) target = $region5
    $region4: #{tpu_custom_call.1} parent=1 // pred_region
      %s11 = ssub.s32 128, 128
      %12 = vsyncadd [#allocation3], %s11
      %s14 = sshll.u32 [#allocation2], 4
      %s15 = int_to_ptr.vmem [resolvable:$true] %s14
      %17 = dma.hbm_to_vmem [thread:$0]  %s0, 128, %s15, [#allocation3]
    $region5: #{tpu_custom_call.1} parent=1 // pred_fallthru
      _
    // Predicated region
    $region6: #{tpu_custom_call.1} parent=1 // pred_check
      _
    $region7: #{tpu_custom_call.1} parent=1 // pred_check_branch
      %19 = sbr.rel (0) target = $region9
    $region8: #{tpu_custom_call.1} parent=1 // pred_region
      %20 = dma.done [#allocation3], 128
    $region9: #{tpu_custom_call.1} parent=1 // pred_fallthru
      _
    %v21 = vld [vmem:[#allocation2] sm:$0xff]
    %22 = vrot.lane.b32.xlu0 %v21, 1
    %v23 = vpop.permute.xlu0 %22
    %24 = vst [vmem:[#allocation5] sm:$0xff] %v23
    // Predicated region
    $region10: #{tpu_custom_call.1} parent=1 // pred_check
      _
    $region11: #{tpu_custom_call.1} parent=1 // pred_check_branch
      %26 = sbr.rel (0) target = $region13
    $region12: #{tpu_custom_call.1} parent=1 // pred_region
      %s28 = ssub.s32 128, 128
      %29 = vsyncadd [#allocation4], %s28
      %s31 = sshll.u32 [#allocation5], 4
      %s32 = int_to_ptr.vmem [resolvable:$true] %s31
      %34 = dma.vmem_to_hbm [thread:$0]  %s32, 128, %s1, [#allocation4]
    $region13: #{tpu_custom_call.1} parent=1 // pred_fallthru
      _
    // Predicated region
    $region14: #{tpu_custom_call.1} parent=1 // pred_check
      _
    $region15: #{tpu_custom_call.1} parent=1 // pred_check_branch
      %36 = sbr.rel (0) target = $region17
    $region16: #{tpu_custom_call.1} parent=1 // pred_region
      %37 = dma.done [#allocation4], 128
    $region17: #{tpu_custom_call.1} parent=1 // pred_fallthru
      _
    %38 = vsyncpa [#allocation3], 1
    %39 = vsyncpa [#allocation4], 1

</llo_original>
